<compile_context>
chip_gen: v5e
topology: v5e:2x2
jax: 0.10.0
libtpu: 0.0.40
codegen_flags: <defaults>
</compile_context>

<pallas_src>
import functools

import jax
import jax.numpy as jnp
from jax.experimental import pallas as pl
from jax.experimental.pallas import tpu as pltpu


# ----------------------------------------------------------------------------
# small static helpers
# ----------------------------------------------------------------------------
def _round_up(x, m):
    return (x + m - 1) // m * m


def _pick_tile(dim, cap):
    for t in (cap, 512, 256, 128, 64, 32, 16, 8):
        if t <= cap and t <= dim and dim % t == 0:
            return t
    return dim


def _time_chunk(s):
    for c in (16, 8, 4, 2):
        if s % c == 0:
            return c
    return 1


# ----------------------------------------------------------------------------
# Kernel 1: generic tiled linear  o = x @ w + b   (used for the hoisted
# input projection of the GRU).  bf16 operands, f32 accumulation.
# ----------------------------------------------------------------------------
def _linear_kernel(x_ref, w_ref, b_ref, o_ref):
    y = jnp.dot(x_ref[...].astype(jnp.bfloat16), w_ref[...],
                preferred_element_type=jnp.float32)
    o_ref[...] = y + b_ref[...]


def linear_forward(x, w, b, *, tn_cap=256, tv_cap=512):
    n, k = x.shape
    _, vo = w.shape
    tn = _pick_tile(n, tn_cap)
    tv = _pick_tile(vo, tv_cap)
    return pl.pallas_call(
        _linear_kernel,
        out_shape=jax.ShapeDtypeStruct((n, vo), jnp.float32),
        grid_spec=pltpu.PrefetchScalarGridSpec(
            num_scalar_prefetch=0,
            grid=(n // tn, vo // tv),
            in_specs=[
                pl.BlockSpec((tn, k), lambda i, j: (i, 0)),
                pl.BlockSpec((k, tv), lambda i, j: (0, j)),
                pl.BlockSpec((1, tv), lambda i, j: (0, j)),
            ],
            out_specs=pl.BlockSpec((tn, tv), lambda i, j: (i, j)),
        ),
        compiler_params=pltpu.CompilerParams(
            dimension_semantics=("parallel", "parallel")),
    )(x, w, b)


# ----------------------------------------------------------------------------
# Kernel 2: GRU recurrence.  Grid iterates over time chunks; hidden state
# lives in VMEM scratch.  Only the fused h @ W_hh (H_pad, 3*H_pad) matmul is
# inside the loop; input projections (incl. folded r/z biases) come in as gi.
# ----------------------------------------------------------------------------
def _gru_kernel(gi_ref, whh_ref, bhn_ref, y_ref, h_ref, *, hidden, chunk):
    @pl.when(pl.program_id(0) == 0)
    def _():
        h_ref[...] = jnp.zeros_like(h_ref)

    whh = whh_ref[...]                     # (H_pad, 3*H_pad) bf16, grid-invariant
    bhn = bhn_ref[...]                     # (1, H_pad) f32
    h = h_ref[...]                         # (B_pad, H_pad) f32

    for t in range(chunk):                 # static unroll of the time chunk
        gi = gi_ref[t]                     # (B_pad, 3*H_pad) = x@W_ih + folded biases
        gh = jnp.dot(h.astype(jnp.bfloat16), whh,
                     preferred_element_type=jnp.float32)
        # PyTorch gate order r, z, n; lane-axis slices at multiples of 128.
        r = jax.nn.sigmoid(gi[:, :hidden] + gh[:, :hidden])
        z = jax.nn.sigmoid(gi[:, hidden:2 * hidden] + gh[:, hidden:2 * hidden])
        n = jnp.tanh(gi[:, 2 * hidden:] + r * (gh[:, 2 * hidden:] + bhn))
        h = (1.0 - z) * n + z * h
        y_ref[t] = h

    h_ref[...] = h


def gru_forward(gi_sbg, w_hh, b_hn, *, hidden):
    s, b, g = gi_sbg.shape                 # g == 3 * hidden
    chunk = _time_chunk(s)
    kernel = functools.partial(_gru_kernel, hidden=hidden, chunk=chunk)
    return pl.pallas_call(
        kernel,
        out_shape=jax.ShapeDtypeStruct((s, b, hidden), jnp.float32),
        grid_spec=pltpu.PrefetchScalarGridSpec(
            num_scalar_prefetch=0,
            grid=(s // chunk,),
            in_specs=[
                pl.BlockSpec((chunk, b, g), lambda c: (c, 0, 0)),
                pl.BlockSpec((hidden, g), lambda c: (0, 0)),
                pl.BlockSpec((1, hidden), lambda c: (0, 0)),
            ],
            out_specs=pl.BlockSpec((chunk, b, hidden), lambda c: (c, 0, 0)),
            scratch_shapes=[pltpu.VMEM((b, hidden), jnp.float32)],
        ),
        compiler_params=pltpu.CompilerParams(
            dimension_semantics=("arbitrary",)),   # sequential recurrence
    )(gi_sbg, w_hh, b_hn)


# ----------------------------------------------------------------------------
# Kernel 3: dropout (precomputed mask) + Linear (+ softmax masked to the real
# vocab).  Tiled over (rows, vocab) with both axes parallel.
# ----------------------------------------------------------------------------
def _dropout_fc_kernel(x_ref, m_ref, w_ref, b_ref, o_ref, *,
                       apply_softmax, v_valid):
    x = x_ref[...] * m_ref[...]            # inverted-scale dropout, f32
    y = jnp.dot(x.astype(jnp.bfloat16), w_ref[...],
                preferred_element_type=jnp.float32) + b_ref[...]
    if apply_softmax:
        # exclude the zero-padded vocab columns from the softmax
        col = jax.lax.broadcasted_iota(jnp.int32, y.shape, 1)
        y = jnp.where(col < v_valid, y, -jnp.inf)
        y = y - jnp.max(y, axis=-1, keepdims=True)
        e = jnp.exp(y)
        y = e / jnp.sum(e, axis=-1, keepdims=True)
    o_ref[...] = y


def dropout_fc_forward(x, mask, w, b, *, apply_softmax, v_valid,
                       tn_cap=256, tv_cap=512):
    n, h = x.shape
    _, vo = w.shape
    tn = _pick_tile(n, tn_cap)
    tv = vo if apply_softmax else _pick_tile(vo, tv_cap)  # softmax needs full rows
    kernel = functools.partial(_dropout_fc_kernel,
                               apply_softmax=apply_softmax, v_valid=v_valid)
    return pl.pallas_call(
        kernel,
        out_shape=jax.ShapeDtypeStruct((n, vo), jnp.float32),
        grid_spec=pltpu.PrefetchScalarGridSpec(
            num_scalar_prefetch=0,
            grid=(n // tn, vo // tv),
            in_specs=[
                pl.BlockSpec((tn, h), lambda i, j: (i, 0)),
                pl.BlockSpec((tn, h), lambda i, j: (i, 0)),
                pl.BlockSpec((h, tv), lambda i, j: (0, j)),
                pl.BlockSpec((1, tv), lambda i, j: (0, j)),
            ],
            out_specs=pl.BlockSpec((tn, tv), lambda i, j: (i, j)),
        ),
        compiler_params=pltpu.CompilerParams(
            dimension_semantics=("parallel", "parallel")),
    )(x, mask, w, b)


# ----------------------------------------------------------------------------
# Parameter init (torch-like) and packing into the fused / padded / bf16 layout
# ----------------------------------------------------------------------------
def init_params(key, num_embeddings, embedding_dim, rnn_hidden_size,
                padding_idx=0):
    V, E, H = num_embeddings, embedding_dim, rnn_hidden_size
    ks = jax.random.split(key, 7)
    k = 1.0 / jnp.sqrt(jnp.float32(H))
    emb = jax.random.normal(ks[0], (V, E), jnp.float32)
    emb = emb.at[padding_idx].set(0.0)
    return {
        "emb": emb,
        # GRU weights gate-major, already transposed for x @ W / h @ W
        "w_ih": jax.random.uniform(ks[1], (3, E, H), jnp.float32, -k, k),
        "w_hh": jax.random.uniform(ks[2], (3, H, H), jnp.float32, -k, k),
        "b_ih": jax.random.uniform(ks[3], (3, H), jnp.float32, -k, k),
        "b_hh": jax.random.uniform(ks[4], (3, H), jnp.float32, -k, k),
        "w_fc": jax.random.uniform(ks[5], (H, V), jnp.float32, -k, k),
        "b_fc": jax.random.uniform(ks[6], (V,), jnp.float32, -k, k),
    }


def pack_params(params):
    emb = params["emb"]
    V, E = emb.shape
    H = params["w_hh"].shape[-1]
    H_pad = _round_up(H, 128)
    V_pad = _round_up(V, 128)

    w_ih = jnp.zeros((E, 3 * H_pad), jnp.float32)
    w_hh = jnp.zeros((H_pad, 3 * H_pad), jnp.float32)
    b_gi = jnp.zeros((1, 3 * H_pad), jnp.float32)
    for g in range(3):
        w_ih = w_ih.at[:, g * H_pad:g * H_pad + H].set(params["w_ih"][g])
        w_hh = w_hh.at[:H, g * H_pad:g * H_pad + H].set(params["w_hh"][g])
    # fold biases: r and z gates get b_ih + b_hh; n gate keeps only b_ih here
    # (b_hn is applied inside r * (gh_n + b_hn) in the kernel).
    b_gi = b_gi.at[0, 0 * H_pad:0 * H_pad + H].set(params["b_ih"][0] + params["b_hh"][0])
    b_gi = b_gi.at[0, 1 * H_pad:1 * H_pad + H].set(params["b_ih"][1] + params["b_hh"][1])
    b_gi = b_gi.at[0, 2 * H_pad:2 * H_pad + H].set(params["b_ih"][2])
    b_hn = jnp.zeros((1, H_pad), jnp.float32).at[0, :H].set(params["b_hh"][2])

    w_fc = jnp.zeros((H_pad, V_pad), jnp.float32).at[:H, :V].set(params["w_fc"])
    b_fc = jnp.zeros((1, V_pad), jnp.float32).at[0, :V].set(params["b_fc"])

    return {
        "emb": emb,
        "w_ih": w_ih.astype(jnp.bfloat16),
        "w_hh": w_hh.astype(jnp.bfloat16),
        "b_gi": b_gi,
        "b_hn": b_hn,
        "w_fc": w_fc.astype(jnp.bfloat16),
        "b_fc": b_fc,
        "dims": (V, E, H, H_pad, V_pad),
    }


# ----------------------------------------------------------------------------
# Full model forward
# ----------------------------------------------------------------------------
def text_gen_forward(packed, input_batch, apply_softmax=False,
                     dropout_p=0.5, dropout_rng=None):
    """input_batch: (B, S) int32 token ids.  Returns (B, S, V) float32."""
    V, E, H, H_pad, V_pad = packed["dims"]
    B, S = input_batch.shape
    B_pad = max(8, _round_up(B, 8))

    # embedding gather directly in time-major order; pad batch to sublane width
    # (padded rows use token 0 == padding_idx, and are sliced off at the end).
    ids = jnp.pad(jnp.transpose(input_batch), ((0, 0), (0, B_pad - B)))  # (S, B_pad)
    x = jnp.take(packed["emb"], ids, axis=0)                             # (S, B_pad, E)

    n_rows = S * B_pad

    # input projection hoisted out of the recurrence: one MXU-friendly matmul
    gi = linear_forward(x.reshape(n_rows, E), packed["w_ih"], packed["b_gi"])
    gi = gi.reshape(S, B_pad, 3 * H_pad)

    # sequential GRU (only h @ W_hh inside the time loop)
    y = gru_forward(gi, packed["w_hh"], packed["b_hn"], hidden=H_pad)    # (S, B_pad, H_pad)
    y = y.reshape(n_rows, H_pad)

    # dropout mask generated with jax.random (pltpu PRNG has no interpret/CPU
    # lowering); mask carries the inverted 1/(1-p) scale.
    if dropout_rng is None:
        dropout_rng = jax.random.PRNGKey(1234)
    if dropout_p > 0.0:
        keep = jax.random.bernoulli(dropout_rng, 1.0 - dropout_p, (n_rows, H_pad))
        mask = keep.astype(jnp.float32) * (1.0 / (1.0 - dropout_p))
    else:
        mask = jnp.ones((n_rows, H_pad), jnp.float32)

    # dropout + fc (+ vocab-masked softmax)
    out = dropout_fc_forward(y, mask, packed["w_fc"], packed["b_fc"],
                             apply_softmax=apply_softmax, v_valid=V)     # (n_rows, V_pad)

    out = out.reshape(S, B_pad, V_pad)[:, :B, :V]
    return jnp.transpose(out, (1, 0, 2))                                 # (B, S, V)


if __name__ == "__main__":
    key = jax.random.PRNGKey(0)
    num_embeddings = 50    # vocab size
    embedding_dim = 16
    rnn_hidden_size = 32
    B, S = 2, 8

    pkey, dkey, mkey = jax.random.split(key, 3)
    params = init_params(pkey, num_embeddings, embedding_dim, rnn_hidden_size,
                         padding_idx=0)
    packed = pack_params(params)
    input_batch = jax.random.randint(dkey, (B, S), 0, num_embeddings,
                                     dtype=jnp.int32)

    out = text_gen_forward(packed, input_batch, apply_softmax=False,
                           dropout_rng=mkey)
    out = jax.block_until_ready(out)
    assert out.shape == (B, S, num_embeddings), out.shape
    assert bool(jnp.all(jnp.isfinite(out)))

    out_sm = text_gen_forward(packed, input_batch, apply_softmax=True,
                              dropout_rng=mkey)
    out_sm = jax.block_until_ready(out_sm)
    assert out_sm.shape == (B, S, num_embeddings), out_sm.shape
    assert bool(jnp.allclose(jnp.sum(out_sm, axis=-1), 1.0, atol=1e-3))

    print("KERNEL_OK")
</pallas_src>

<mosaic_0001>
module attributes {stable_mosaic.version = 11 : i64} {
  func.func @_linear_kernel(%arg0: i32, %arg1: i32, %arg2: memref<64x16xf32, #tpu.memory_space<vmem>>, %arg3: memref<16x128xbf16, #tpu.memory_space<vmem>>, %arg4: memref<1x128xf32, #tpu.memory_space<vmem>>, %arg5: memref<64x128xf32, #tpu.memory_space<vmem>>) attributes {dimension_semantics = [#tpu.dimension_semantics<parallel>, #tpu.dimension_semantics<parallel>], iteration_bounds = array<i64: 1, 3>, scalar_prefetch = 0 : i64, scratch_operands = 0 : i64, tpu.core_type = #tpu.core_type<tc>, window_params = [{transform_indices = @transform_0, window_bounds = array<i64: 64, 16>}, {transform_indices = @transform_1, window_bounds = array<i64: 16, 128>}, {transform_indices = @transform_2, window_bounds = array<i64: 1, 128>}, {transform_indices = @transform_3, window_bounds = array<i64: 64, 128>}]} {
    %c0 = arith.constant 0 : index
    %c0_0 = arith.constant 0 : index
    %0 = vector.load %arg2[%c0, %c0_0] : memref<64x16xf32, #tpu.memory_space<vmem>>, vector<64x16xf32>
    %1 = arith.truncf %0 : vector<64x16xf32> to vector<64x16xbf16>
    %c0_1 = arith.constant 0 : index
    %c0_2 = arith.constant 0 : index
    %2 = vector.load %arg3[%c0_1, %c0_2] : memref<16x128xbf16, #tpu.memory_space<vmem>>, vector<16x128xbf16>
    %cst = arith.constant dense<0.000000e+00> : vector<64x128xf32>
    %3 = tpu.matmul %1, %2, %cst {dimension_numbers = #tpu.dot_dimension_numbers<[1], [0], [0], [1], [0, 0, 1, 1], [], []>} : vector<64x16xbf16>, vector<16x128xbf16>, vector<64x128xf32> -> vector<64x128xf32>
    %c0_3 = arith.constant 0 : index
    %c0_4 = arith.constant 0 : index
    %4 = vector.load %arg4[%c0_3, %c0_4] : memref<1x128xf32, #tpu.memory_space<vmem>>, vector<1x128xf32>
    %5 = vector.broadcast %4 : vector<1x128xf32> to vector<64x128xf32>
    %6 = arith.addf %3, %5 : vector<64x128xf32>
    %c0_5 = arith.constant 0 : index
    %c0_6 = arith.constant 0 : index
    %7 = vector.load %arg5[%c0_5, %c0_6] : memref<64x128xf32, #tpu.memory_space<vmem>>, vector<64x128xf32>
    tpu.vector_store %arg5[%c0_5, %c0_6], %6 {strides = array<i32>} : memref<64x128xf32, #tpu.memory_space<vmem>>, vector<64x128xf32>,
    return
  }
  func.func @transform_0(%arg0: i32, %arg1: i32) -> (i32, i32) {
    %c0_i32 = arith.constant 0 : i32
    %c0_i32_0 = arith.constant 0 : i32
    return %arg0, %c0_i32 : i32, i32
  }
  func.func @transform_1(%arg0: i32, %arg1: i32) -> (i32, i32) {
    %c0_i32 = arith.constant 0 : i32
    %c0_i32_0 = arith.constant 0 : i32
    return %c0_i32, %arg1 : i32, i32
  }
  func.func @transform_2(%arg0: i32, %arg1: i32) -> (i32, i32) {
    %c0_i32 = arith.constant 0 : i32
    %c0_i32_0 = arith.constant 0 : i32
    return %c0_i32, %arg1 : i32, i32
  }
  func.func @transform_3(%arg0: i32, %arg1: i32) -> (i32, i32) {
    %c0_i32 = arith.constant 0 : i32
    return %arg0, %arg1 : i32, i32
  }
}

</mosaic_0001>

<llo_original>
// kernel: tpu_custom_call.1
$region0: #{tpu_custom_call.1}
  #allocation0 [shape = 'u32[]', space=smem, size = 0x4, offset = 0x4, fixed_abs, tag = 'smem constant byte address 0x4 - core index']
  #allocation1 [shape = 'u32[72,128]{1,0:T(1,128)}', space=vmem, size = 0x9000, scoped, tag = 'internal scratch']
  %s0 = inlined_call_operand.vmem [shape: f32[64,16], index: 0, kind: input, shape index: {}]
  %s1 = inlined_call_operand.vmem [shape: bf16[16,384], index: 1, kind: input, shape index: {}]
  %s2 = inlined_call_operand.vmem [shape: f32[1,384], index: 2, kind: input, shape index: {}]
  %s3 = inlined_call_operand.hbm [shape: f32[64,384], index: 3, kind: output, shape index: {}]
  %s4 = sld [smem:[#allocation0]]
  $region86: #{tpu_custom_call.1} parent=0
    _
  %s6 = ssub.s32 1, %s4
  %s7 = scalar_select 0, %s6, %s4
  $region1: #{tpu_custom_call.1} parent=0
    #allocation2 [shape = 'u8[8192]{0}', space=vmem, size = 0x2000, scoped, tag = 'input window, operand 1']
    #allocation3 [shape = 'u8[65536]{0}', space=vmem, size = 0x10000, scoped, tag = 'output window, operand 0']
    #allocation4 [shape = 's32[2]{0}', space=sflag, size = 0x8, scoped, tag = 'scoped memory for tpu_custom_call.1']
    %8 = vsyncpa [#allocation4], 0
    %s9 = scalar_lea.sflag [#allocation4], 1
    %10 = vsyncpa %s9, 0
    loop: start=0, step=1, limit=5
    $region2: #{tpu_custom_call.1} parent=1 // loop_pre_header
      _
    $region3: #{tpu_custom_call.1} parent=1 // loop_header
      %s12 = sphi 0, %s16
      %p13 = scmp.ge.s32.totalorder %s12, 5
      %s19 = sphi 0, %s31
      %s20 = sphi 0, %s27
      %s21 = sphi 0, %s19
      %s22 = sphi 0, %s20
      %s23 = sphi 0, %s21
      %s24 = sphi 0, %s22
      %s34 = sphi 0, %s36
      %s37 = sphi 0, %s34
      %s38 = sphi 0, %s37
      %s54 = sphi 0, %s38
      %s60 = sphi 0, %s62
      %s63 = sphi 0, %s60
      %s64 = sphi 0, %s63
      %s80 = sphi 0, %s64
      %s86 = sphi 0, %s88
      %s89 = sphi 0, %s86
      %s90 = sphi 0, %s89
      %s106 = sphi 0, %s90
      %s114 = sphi 0, %s116
      %s117 = sphi 0, %s114
      %s118 = sphi 0, %s117
      %s134 = sphi 0, %s118
    $region4: #{tpu_custom_call.1} parent=1 // loop_header_branch
      %15 = sbr.rel (%p13) target = $region8
    $region5: #{tpu_custom_call.1} parent=1 // loop_body
      %s17 = ssub.s32 %s12, 1
      %s18 = ssub.s32 %s12, 2
      %s25 = sadd.s32 1, %s20
      %p26 = scmp.ge.s32.totalorder %s25, 3
      %s27 = scalar_select %p26, 0, %s25
      %s28 = sadd.s32 1, %s19
      %s29 = scalar_select %p26, %s28, %s19
      %p30 = scmp.ge.s32.totalorder %s29, 1
      %s31 = scalar_select %p30, 0, %s29
      %s32 = ssub.s32 %s19, %s31
      %p33 = scmp.eq.s32.totalorder %s32, 0
      %s35 = sadd.s32 %s34, 1
      %s36 = scalar_select %p33, %s34, %s35
      %p39 = pneg %p33
      %p40 = scmp.eq.s32.totalorder %s12, 2
      %p41 = por %p39, %p40
      %p42 = scmp.ne.s32.totalorder %s34, %s37
      %p43 = scmp.eq.s32.totalorder %s12, 0
      %p44 = por %p42, %p43
      %p45 = scmp.ne.s32.totalorder %s34, %s37
      %p46 = scmp.eq.s32.totalorder %s17, 2
      %p47 = por %p45, %p46
      %p48 = scmp.ne.s32.totalorder %s37, %s38
      %p49 = scmp.eq.s32.totalorder %s17, 0
      %p50 = por %p48, %p49
      %p51 = scmp.ne.s32.totalorder %s37, %s38
      %p52 = scmp.eq.s32.totalorder %s18, 2
      %p53 = por %p51, %p52
      %p55 = scmp.ne.s32.totalorder %s38, %s54
      %p56 = scmp.eq.s32.totalorder %s18, 0
      %p57 = por %p55, %p56
      %s58 = ssub.s32 %s20, %s27
      %p59 = scmp.eq.s32.totalorder %s58, 0
      %s61 = sadd.s32 %s60, 1
      %s62 = scalar_select %p59, %s60, %s61
      %p65 = pneg %p59
      %p66 = scmp.eq.s32.totalorder %s12, 2
      %p67 = por %p65, %p66
      %p68 = scmp.ne.s32.totalorder %s60, %s63
      %p69 = scmp.eq.s32.totalorder %s12, 0
      %p70 = por %p68, %p69
      %p71 = scmp.ne.s32.totalorder %s60, %s63
      %p72 = scmp.eq.s32.totalorder %s17, 2
      %p73 = por %p71, %p72
      %p74 = scmp.ne.s32.totalorder %s63, %s64
      %p75 = scmp.eq.s32.totalorder %s17, 0
      %p76 = por %p74, %p75
      %p77 = scmp.ne.s32.totalorder %s63, %s64
      %p78 = scmp.eq.s32.totalorder %s18, 2
      %p79 = por %p77, %p78
      %p81 = scmp.ne.s32.totalorder %s64, %s80
      %p82 = scmp.eq.s32.totalorder %s18, 0
      %p83 = por %p81, %p82
      %s84 = ssub.s32 %s20, %s27
      %p85 = scmp.eq.s32.totalorder %s84, 0
      %s87 = sadd.s32 %s86, 1
      %s88 = scalar_select %p85, %s86, %s87
      %p91 = pneg %p85
      %p92 = scmp.eq.s32.totalorder %s12, 2
      %p93 = por %p91, %p92
      %p94 = scmp.ne.s32.totalorder %s86, %s89
      %p95 = scmp.eq.s32.totalorder %s12, 0
      %p96 = por %p94, %p95
      %p97 = scmp.ne.s32.totalorder %s86, %s89
      %p98 = scmp.eq.s32.totalorder %s17, 2
      %p99 = por %p97, %p98
      %p100 = scmp.ne.s32.totalorder %s89, %s90
      %p101 = scmp.eq.s32.totalorder %s17, 0
      %p102 = por %p100, %p101
      %p103 = scmp.ne.s32.totalorder %s89, %s90
      %p104 = scmp.eq.s32.totalorder %s18, 2
      %p105 = por %p103, %p104
      %p107 = scmp.ne.s32.totalorder %s90, %s106
      %p108 = scmp.eq.s32.totalorder %s18, 0
      %p109 = por %p107, %p108
      %s110 = ssub.s32 %s19, %s31
      %s111 = ssub.s32 %s20, %s27
      %s112 = sor.u32 %s110, %s111
      %p113 = scmp.eq.s32.totalorder %s112, 0
      %s115 = sadd.s32 %s114, 1
      %s116 = scalar_select %p113, %s114, %s115
      %p119 = pneg %p113
      %p120 = scmp.eq.s32.totalorder %s12, 2
      %p121 = por %p119, %p120
      %p122 = scmp.ne.s32.totalorder %s114, %s117
      %p123 = scmp.eq.s32.totalorder %s12, 0
      %p124 = por %p122, %p123
      %p125 = scmp.ne.s32.totalorder %s114, %s117
      %p126 = scmp.eq.s32.totalorder %s17, 2
      %p127 = por %p125, %p126
      %p128 = scmp.ne.s32.totalorder %s117, %s118
      %p129 = scmp.eq.s32.totalorder %s17, 0
      %p130 = por %p128, %p129
      %p131 = scmp.ne.s32.totalorder %s117, %s118
      %p132 = scmp.eq.s32.totalorder %s18, 2
      %p133 = por %p131, %p132
      %p135 = scmp.ne.s32.totalorder %s118, %s134
      %p136 = scmp.eq.s32.totalorder %s18, 0
      %p137 = por %p135, %p136
      %p138 = scmp.le.s32.totalorder 1, %s12
      %p139 = scmp.lt.s32.totalorder %s12, 4
      %p140 = pnand %p138, %p139
      %p141 = pneg %p140
      // Predicated region
      $region9: #{tpu_custom_call.1} parent=5 // pred_check
        _
      $region10: #{tpu_custom_call.1} parent=5 // pred_check_branch
        %143 = sbr.rel (%p140) target = $region12
      $region11: #{tpu_custom_call.1} parent=5 // pred_region
        %s144 = ssub.s32 %s12, 1
        // Predicated region
        $region13: #{tpu_custom_call.1} parent=11 // pred_check
          %p145 = pneg %p50
        $region14: #{tpu_custom_call.1} parent=11 // pred_check_branch
          %147 = sbr.rel (%p145) target = $region16
        $region15: #{tpu_custom_call.1} parent=11 // pred_region
          %s148 = smul.u32 8, %s21
          %p149 = scmp.lt.s32.totalorder %s148, 7
          %s150 = scalar_select %p149, %s148, 7
          %s151 = smul.addr %s150, 8
          %s152 = scalar_lea.vmem %s0, %s151
          %s153 = smul.u32 8, %s21
        $region16: #{tpu_custom_call.1} parent=11 // pred_fallthru
          _
      $region12: #{tpu_custom_call.1} parent=5 // pred_fallthru
        _
      %p154 = scmp.lt.s32.totalorder %s12, 3
      // Predicated region
      $region17: #{tpu_custom_call.1} parent=5 // pred_check
        %p155 = pneg %p154
      $region18: #{tpu_custom_call.1} parent=5 // pred_check_branch
        %157 = sbr.rel (%p155) target = $region20
      $region19: #{tpu_custom_call.1} parent=5 // pred_region
        // Predicated region
        $region21: #{tpu_custom_call.1} parent=19 // pred_check
          %p158 = pneg %p70
        $region22: #{tpu_custom_call.1} parent=19 // pred_check_branch
          %160 = sbr.rel (%p158) target = $region24
        $region23: #{tpu_custom_call.1} parent=19 // pred_region
          %s161 = sand.u32 %s60, 1
          %s162 = sand.u32 %s60, 1
          %s163 = smul.addr %s162, 8
          %s164 = scalar_lea.vmem [#allocation2], %s163
          %s165 = smul.addr %s20, 4
          %s166 = scalar_lea.vmem %s1, %s165
          // Predicated region
          $region25: #{tpu_custom_call.1} parent=23 // pred_check
            _
          $region26: #{tpu_custom_call.1} parent=23 // pred_check_branch
            %168 = sbr.rel (0) target = $region28
          $region27: #{tpu_custom_call.1} parent=23 // pred_region
            // Predicated region
            $region29: #{tpu_custom_call.1} parent=27 // pred_check
              _
            $region30: #{tpu_custom_call.1} parent=27 // pred_check_branch
              %170 = sbr.rel target = $region32
            $region31: #{tpu_custom_call.1} parent=27 // pred_region
              // Predicated region
              $region44: #{tpu_custom_call.1} parent=31 // pred_check
                _
              $region45: #{tpu_custom_call.1} parent=31 // pred_check_branch
                %188 = sbr.rel (0) target = $region47
              $region46: #{tpu_custom_call.1} parent=31 // pred_region
                loop: start=0, step=1, limit=1
                $region48: #{tpu_custom_call.1} parent=46 // loop_pre_header
                  _
                $region49: #{tpu_custom_call.1} parent=46 // loop_header
                  %s190 = sphi 0, %s194
                  %p191 = scmp.ge.s32.totalorder %s190, 1
                  %s195 = sphi %s166, %s166
                  %s196 = sphi %s164, %s164
                $region50: #{tpu_custom_call.1} parent=46 // loop_header_branch
                  %193 = sbr.rel (%p191) target = $region54
                $region51: #{tpu_custom_call.1} parent=46 // loop_body
                  _
                $region52: #{tpu_custom_call.1} parent=46 // loop_footer
                  %s194 = sadd.s32 1, %s190
                $region53: #{tpu_custom_call.1} parent=46 // loop_footer_branch
                  %189 = sbr.rel target = $region49
                $region54: #{tpu_custom_call.1} parent=46 // loop_exit
                  _
                %s198 = ssub.s32 16, 1
                loop: start=0, step=1, limit=1
                $region55: #{tpu_custom_call.1} parent=46 // loop_pre_header
                  _
                $region56: #{tpu_custom_call.1} parent=46 // loop_header
                  %s200 = sphi 0, %s204
                  %p201 = scmp.ge.s32.totalorder %s200, 1
                  %s205 = sphi %s166, %s166
                  %s206 = sphi %s164, %s164
                $region57: #{tpu_custom_call.1} parent=46 // loop_header_branch
                  %203 = sbr.rel (%p201) target = $region61
                $region58: #{tpu_custom_call.1} parent=46 // loop_body
                  %v207 = vld [vmem:[%s205] sm:%s198]
                  %208 = vst [vmem:[%s206] sm:%s198] %v207
                  %v209 = vld [vmem:[%s205 + $0xc] sm:%s198]
                  %210 = vst [vmem:[%s206 + $0x4] sm:%s198] %v209
                $region59: #{tpu_custom_call.1} parent=46 // loop_footer
                  %s204 = sadd.s32 1, %s200
                $region60: #{tpu_custom_call.1} parent=46 // loop_footer_branch
                  %199 = sbr.rel target = $region56
                $region61: #{tpu_custom_call.1} parent=46 // loop_exit
                  _
              $region47: #{tpu_custom_call.1} parent=31 // pred_fallthru
                _
            $region32: #{tpu_custom_call.1} parent=27 // pred_fallthru
              _
            // Predicated region
            $region33: #{tpu_custom_call.1} parent=27 // pred_check
              _
            $region34: #{tpu_custom_call.1} parent=27 // pred_check_branch
              %172 = sbr.rel (0) target = $region36
            $region35: #{tpu_custom_call.1} parent=27 // pred_region
              %s174 = ssub.s32 16, 1
              loop: start=0, step=1, limit=1
              $region37: #{tpu_custom_call.1} parent=35 // loop_pre_header
                _
              $region38: #{tpu_custom_call.1} parent=35 // loop_header
                %s176 = sphi 0, %s180
                %p177 = scmp.ge.s32.totalorder %s176, 1
                %s181 = sphi %s166, %s166
                %s182 = sphi %s164, %s164
              $region39: #{tpu_custom_call.1} parent=35 // loop_header_branch
                %179 = sbr.rel (%p177) target = $region43
              $region40: #{tpu_custom_call.1} parent=35 // loop_body
                %v183 = vld [vmem:[%s181] sm:%s174]
                %184 = vst [vmem:[%s182] sm:%s174] %v183
                %v185 = vld [vmem:[%s181 + $0xc] sm:%s174]
                %186 = vst [vmem:[%s182 + $0x4] sm:%s174] %v185
              $region41: #{tpu_custom_call.1} parent=35 // loop_footer
                %s180 = sadd.s32 1, %s176
              $region42: #{tpu_custom_call.1} parent=35 // loop_footer_branch
                %175 = sbr.rel target = $region38
              $region43: #{tpu_custom_call.1} parent=35 // loop_exit
                _
            $region36: #{tpu_custom_call.1} parent=27 // pred_fallthru
              _
          $region28: #{tpu_custom_call.1} parent=23 // pred_fallthru
            _
          %211 = vnop
        $region24: #{tpu_custom_call.1} parent=19 // pred_fallthru
          _
        // Predicated region
        $region62: #{tpu_custom_call.1} parent=19 // pred_check
          %p212 = pneg %p96
        $region63: #{tpu_custom_call.1} parent=19 // pred_check_branch
          %214 = sbr.rel (%p212) target = $region65
        $region64: #{tpu_custom_call.1} parent=19 // pred_region
          %p215 = scmp.lt.s32.totalorder %s20, 2
          %s216 = scalar_select %p215, %s20, 2
          %s217 = scalar_lea.vmem %s2, %s216
        $region65: #{tpu_custom_call.1} parent=19 // pred_fallthru
          _
      $region20: #{tpu_custom_call.1} parent=5 // pred_fallthru
        _
      %p218 = scmp.le.s32.totalorder 1, %s12
      %p219 = scmp.lt.s32.totalorder %s12, 4
      %p220 = pnand %p218, %p219
      %p221 = pneg %p220
      // Predicated region
      $region66: #{tpu_custom_call.1} parent=5 // pred_check
        _
      $region67: #{tpu_custom_call.1} parent=5 // pred_check_branch
        %223 = sbr.rel (%p220) target = $region69
      $region68: #{tpu_custom_call.1} parent=5 // pred_region
        %s224 = ssub.s32 %s12, 1
        %s225 = sand.u32 %s63, 1
        %s226 = sand.u32 %s63, 1
        %s227 = smul.addr %s226, 8
        %s228 = scalar_lea.vmem [#allocation2], %s227
        // Predicated region
        $region70: #{tpu_custom_call.1} parent=68 // pred_check
          %p229 = pneg %p76
        $region71: #{tpu_custom_call.1} parent=68 // pred_check_branch
          %231 = sbr.rel (%p229) target = $region73
        $region72: #{tpu_custom_call.1} parent=68 // pred_region
          _
        $region73: #{tpu_custom_call.1} parent=68 // pred_fallthru
          _
        %s232 = smul.u32 8, %s21
        %p233 = scmp.lt.s32.totalorder %s232, 7
        %s234 = scalar_select %p233, %s232, 7
        %s235 = smul.addr %s234, 8
        %s236 = scalar_lea.vmem %s0, %s235
        %p237 = pneg %p50
        %p238 = pneg %p47
        %s239 = sand.u32 %s63, 1
        %s240 = sand.u32 %s63, 1
        %s241 = smul.addr %s240, 8
        %s242 = scalar_lea.vmem [#allocation2], %s241
        %p243 = pneg %p76
        %p244 = pneg %p73
        %p245 = scmp.lt.s32.totalorder %s22, 2
        %s246 = scalar_select %p245, %s22, 2
        %s247 = scalar_lea.vmem %s2, %s246
        %p248 = pneg %p102
        %p249 = pneg %p99
        %p250 = pneg %p130
        %p251 = pneg %p127
        %s252 = sand.u32 %s117, 1
        %s253 = scalar_lea.sflag [#allocation4], %s252
        %s254 = sand.u32 %s117, 1
        %s255 = smul.addr %s254, 64
        %s256 = scalar_lea.vmem [#allocation3], %s255
        %s257 = smul.u32 8, %s21
        %p258 = scmp.lt.s32.totalorder %s257, 7
        %s259 = scalar_select %p258, %s257, 7
        %s260 = smul.addr %s259, 8
        %s261 = scalar_lea.vmem %s0, %s260
        %s262 = smul.u32 8, %s21
        %p263 = scmp.lt.s32.totalorder %s22, 2
        %s264 = scalar_select %p263, %s22, 2
        %s265 = scalar_lea.vmem %s2, %s264
        %s266 = smul.u32 8, %s21
        %v268 = vld [vmem:[%s261] sm:$0xff]
        %v269 = vld [vmem:[%s261 + $0x8] sm:$0xff]
        %v270 = vld [vmem:[%s261 + $0x10] sm:$0xff]
        %v271 = vld [vmem:[%s261 + $0x18] sm:$0xff]
        %v272 = vld [vmem:[%s261 + $0x20] sm:$0xff]
        %v273 = vld [vmem:[%s261 + $0x28] sm:$0xff]
        %v274 = vld [vmem:[%s261 + $0x30] sm:$0xff]
        %v275 = vld [vmem:[%s261 + $0x38] sm:$0xff]
        %v276 = vpack.c.bf16 %v269, %v268
        %v277 = vpack.c.bf16 %v271, %v270
        %v278 = vpack.c.bf16 %v273, %v272
        %v279 = vpack.c.bf16 %v275, %v274
        %v280 = vld [vmem:[%s228] sm:$0xf]
        %v281 = vld [vmem:[%s228 + $0x4] sm:$0xf]
        %v282 = vld [vmem:[%s265] sm:$0x1]
        %v284 = vperm.slane %v282, 0
        %v288 = vunpack.c.l.b16 %v280
        %v289 = vunpack.c.l.b16 %v281
        %v290 = vpack.c.b16 %v289, %v288
        %vm292 = vcmask 130048
        %v294 = vsel %vm292, %v276, 0
        %v297 = vsel %vm292, %v277, 0
        %v300 = vsel %vm292, %v278, 0
        %v303 = vsel %vm292, %v279, 0
        %305 = vmatpush.bf16.msra.mxu0 0
        %306 = vmatpush.bf16.msra.mxu0 0
        %307 = vmatpush.bf16.msra.mxu0 0
        %308 = vmatpush.bf16.msra.mxu0 0
        %309 = vmatpush.bf16.msra.mxu0 0
        %310 = vmatpush.bf16.msra.mxu0 0
        %311 = vmatpush.bf16.msra.mxu0 0
        %312 = vmatpush.bf16.msra.mxu0 %v290
        %313 = vmatmul.bf16.gmra.mxu0 %v294
        %v314 = vpop.f32.mrf.mxu0
        %v315 = vadd.f32 %v284, %v314
        %v316 = vpop.f32.mrf.mxu0
        %v317 = vadd.f32 %v284, %v316
        %318 = vmatmul.bf16.gmra.mxu0 %v297
        %v319 = vpop.f32.mrf.mxu0
        %v320 = vadd.f32 %v284, %v319
        %v321 = vpop.f32.mrf.mxu0
        %v322 = vadd.f32 %v284, %v321
        %323 = vmatmul.bf16.gmra.mxu0 %v300
        %v324 = vpop.f32.mrf.mxu0
        %v325 = vadd.f32 %v284, %v324
        %v326 = vpop.f32.mrf.mxu0
        %v327 = vadd.f32 %v284, %v326
        %328 = vmatmul.bf16.gmra.mxu0 %v303
        %v329 = vpop.f32.mrf.mxu0
        %v330 = vadd.f32 %v284, %v329
        %v331 = vpop.f32.mrf.mxu0
        %v332 = vadd.f32 %v284, %v331
        %333 = vdwg.mxu0
        %334 = vst [vmem:[%s256] sm:$0xff] %v315
        %335 = vst [vmem:[%s256 + $0x8] sm:$0xff] %v317
        %336 = vst [vmem:[%s256 + $0x10] sm:$0xff] %v320
        %337 = vst [vmem:[%s256 + $0x18] sm:$0xff] %v322
        %338 = vst [vmem:[%s256 + $0x20] sm:$0xff] %v325
        %339 = vst [vmem:[%s256 + $0x28] sm:$0xff] %v327
        %340 = vst [vmem:[%s256 + $0x30] sm:$0xff] %v330
        %341 = vst [vmem:[%s256 + $0x38] sm:$0xff] %v332
        %s342 = sand.u32 %s117, 1
        %s343 = scalar_lea.sflag [#allocation4], %s342
        %s344 = sand.u32 %s117, 1
        %s345 = smul.addr %s344, 64
        %s346 = scalar_lea.vmem [#allocation3], %s345
        // Predicated region
        $region74: #{tpu_custom_call.1} parent=68 // pred_check
          %p347 = pneg %p127
        $region75: #{tpu_custom_call.1} parent=68 // pred_check_branch
          %349 = sbr.rel (%p347) target = $region77
        $region76: #{tpu_custom_call.1} parent=68 // pred_region
          %s350 = smul.u32 8, %s21
          %352 = vsyncadd %s343, 0
          %s353 = smul.addr %s350, 3
          %s354 = sadd.s32 %s22, %s353
          %s355 = smul.addr %s354, 8
          %s356 = scalar_lea.hbm %s3, %s355
          %s357 = sshll.u32 %s346, 4
          %s358 = int_to_ptr.vmem [resolvable:$true] %s357
          %s359 = sshll.u32 %s356, 4
          %s360 = int_to_ptr.hbm [resolvable:$true] %s359
          %365 = dma.vmem_to_hbm [thread:$0]  %s358, 1024, %s360, %s343, 128, 384, 8
        $region77: #{tpu_custom_call.1} parent=68 // pred_fallthru
          _
      $region69: #{tpu_custom_call.1} parent=5 // pred_fallthru
        _
      %p366 = scmp.le.s32.totalorder 2, %s12
      // Predicated region
      $region78: #{tpu_custom_call.1} parent=5 // pred_check
        %p367 = pneg %p366
      $region79: #{tpu_custom_call.1} parent=5 // pred_check_branch
        %369 = sbr.rel (%p367) target = $region81
      $region80: #{tpu_custom_call.1} parent=5 // pred_region
        %s370 = ssub.s32 %s12, 2
        // Predicated region
        $region82: #{tpu_custom_call.1} parent=80 // pred_check
          %p371 = pneg %p133
        $region83: #{tpu_custom_call.1} parent=80 // pred_check_branch
          %373 = sbr.rel (%p371) target = $region85
        $region84: #{tpu_custom_call.1} parent=80 // pred_region
          %s374 = sand.u32 %s118, 1
          %s375 = scalar_lea.sflag [#allocation4], %s374
          %s376 = sand.u32 %s118, 1
          %s377 = smul.addr %s376, 64
          %s378 = scalar_lea.vmem [#allocation3], %s377
          %380 = dma.done %s375, 1024
        $region85: #{tpu_custom_call.1} parent=80 // pred_fallthru
          _
      $region81: #{tpu_custom_call.1} parent=5 // pred_fallthru
        _
    $region6: #{tpu_custom_call.1} parent=1 // loop_footer
      %s16 = sadd.s32 1, %s12
    $region7: #{tpu_custom_call.1} parent=1 // loop_footer_branch
      %11 = sbr.rel target = $region3
    $region8: #{tpu_custom_call.1} parent=1 // loop_exit
      _
    %381 = vsyncpa [#allocation4], 1
    %s382 = scalar_lea.sflag [#allocation4], 1
    %383 = vsyncpa %s382, 1

</llo_original>
